<compile_context>
chip_gen: v7x
topology: tpu7x:2x2x1
jax: 0.10.0
libtpu: 0.0.40
codegen_flags: <defaults>
</compile_context>

<pallas_src>
import math

import jax
import jax.numpy as jnp
from jax.experimental import pallas as pl
from jax.experimental.pallas import tpu as pltpu


def _round_up(x, m):
    return ((x + m - 1) // m) * m


# ------------------------------ Pallas kernels ------------------------------


def _stats_kernel(x_ref, g_ref, s_ref):
    """Pass 1: per-tile Gram matrix G = X X^T (Cin,Cin) and channel sum s = X 1 (Cin,1).

    These are the only reductions over M needed for the BN batch statistics; the
    per-column conv stats are recovered from (G, s) on the host with O(Cin^2 * Ncols)
    work, eliminating the previous version's full M x Cin x Ncols stats matmul.
    """
    x = x_ref[...].astype(jnp.float32)                 # (Cin, tm)
    # NT contraction over the lane (token) axis -> tiny (Cin, Cin) MXU matmul.
    g_ref[0] = jax.lax.dot_general(
        x, x, (((1,), (1,)), ((), ())), preferred_element_type=jnp.float32)
    s_ref[0] = jnp.sum(x, axis=1, keepdims=True)       # (Cin, 1)


def _deconv_bn_kernel(w_ref, x_ref, scale_ref, shift_ref, o_ref):
    """Pass 2: Yt tile = Wf @ Xt tile + folded BN affine.  Lane axis = tokens (dense)."""
    y = jnp.dot(w_ref[...], x_ref[...], preferred_element_type=jnp.float32)  # (Ncols, tm)
    o_ref[...] = y * scale_ref[...] + shift_ref[...]   # (Ncols,1) lane-broadcast


# ------------------------------- host wrapper --------------------------------


def _pick_tile_m(M, Ncols, Cin, *, budget_bytes=24 << 20, tm_cap=2048):
    """Largest token-tile (lane) size whose double-buffered blocks fit the VMEM budget."""
    cin_sub = _round_up(Cin, 8)          # Xt block sublane padding
    cin_lane = _round_up(Cin, 128)       # Wf block lane padding
    fixed = 2 * Ncols * cin_lane * 2                   # Wf (bf16), double-buffered
    fixed += 2 * 2 * Ncols * 128 * 4                   # scale + shift (f32, lane-padded)
    per_m = 2 * Ncols * 4 + 2 * cin_sub * 2            # out f32 + Xt bf16, double-buffered
    tm = max(128, (budget_bytes - fixed) // per_m)
    tm = min(tm, tm_cap, _round_up(M, 128))
    return max(128, (tm // 128) * 128)


def transpose_conv_forward(x_nchw, weight, bias, gamma, beta, *, stride=2,
                           eps=1e-5, tm=None):
    """Forward of TransposeConv (ConvTranspose2d + train-mode BatchNorm2d). NCHW f32 out."""
    N, Cin, H, W = x_nchw.shape
    Cin_w, Cout, KH, KW = weight.shape   # PyTorch ConvTranspose2d layout: (Cin, Cout, KH, KW)
    assert Cin == Cin_w
    # TODO(synk): general ConvTranspose2d with kernel != stride needs an overlapping
    # scatter-add; the module's default (kernel=(2,2), stride=2) is non-overlapping.
    assert (KH, KW) == (stride, stride), "only kernel == stride supported"

    # bias intentionally unused: train-mode BN subtracts the batch mean, which cancels a
    # constant per-channel bias exactly.  (NOT valid for eval-mode / running-stats BN.)
    del bias

    KK = KH * KW
    Cout_pad = _round_up(Cout, 2)        # Ncols multiple of 8 (sublane); no x128 pad needed
    Ncols = Cout_pad * KK

    M = N * H * W
    if tm is None:
        tm = _pick_tile_m(M, Ncols, Cin)
    assert tm % 128 == 0
    n_rows = int(pl.cdiv(M, tm))
    M_pad = n_rows * tm

    # --- glue: channel-major tokens (Cin, M); bf16 for the MXU; zero-pad M to a tile ---
    x_cm = jnp.transpose(x_nchw, (1, 0, 2, 3)).reshape(Cin, M).astype(jnp.float32)
    x_cm = jnp.pad(x_cm, ((0, 0), (0, M_pad - M))).astype(jnp.bfloat16)

    # --- glue: weight (Cin, Cout, KH, KW) -> Wf (Ncols, Cin), rows ordered (c, kh, kw) ---
    w_t = jnp.transpose(weight, (1, 2, 3, 0)).astype(jnp.float32)   # (Cout, KH, KW, Cin)
    w_t = jnp.pad(w_t, ((0, Cout_pad - Cout), (0, 0), (0, 0), (0, 0)))
    w_flat = w_t.reshape(Ncols, Cin).astype(jnp.bfloat16)

    compiler_params = pltpu.CompilerParams(
        dimension_semantics=("parallel",), vmem_limit_bytes=32 << 20)

    # --- pass 1: Gram + channel-sum partials over the narrow X stream only ---
    g_part, s_part = pl.pallas_call(
        _stats_kernel,
        out_shape=(jax.ShapeDtypeStruct((n_rows, Cin, Cin), jnp.float32),
                   jax.ShapeDtypeStruct((n_rows, Cin, 1), jnp.float32)),
        grid_spec=pltpu.PrefetchScalarGridSpec(
            num_scalar_prefetch=0,
            grid=(n_rows,),
            in_specs=[pl.BlockSpec((Cin, tm), lambda i: (0, i))],
            out_specs=(pl.BlockSpec((1, Cin, Cin), lambda i: (i, 0, 0)),
                       pl.BlockSpec((1, Cin, 1), lambda i: (i, 0, 0))),
        ),
        compiler_params=compiler_params,
    )(x_cm)

    # --- glue: fold batch statistics into a per-(c,kh,kw)-row affine (tiny host math) ---
    w_f32 = w_flat.astype(jnp.float32)                 # matches what pass 2 actually uses
    g = jnp.sum(g_part, axis=0)                        # (Cin, Cin)  sum_m x x^T
    s = jnp.sum(s_part, axis=0)[:, 0]                  # (Cin,)      sum_m x
    x_bar = s / M
    g_c = g - jnp.outer(s, s) / M                      # centered Gram (less cancellation)
    ybar_col = w_f32 @ x_bar                           # per-column mean        (Ncols,)
    ssd_col = jnp.einsum("rc,cd,rd->r", w_f32, g_c, w_f32)   # per-column sum sq dev
    ybar_ck = ybar_col.reshape(Cout_pad, KK)[:Cout]
    ssd_ck = ssd_col.reshape(Cout_pad, KK)[:Cout]
    count = float(M * KK)                              # = N * H_out * W_out
    mean = jnp.mean(ybar_ck, axis=1)                   # per-channel batch mean
    var = (jnp.sum(ssd_ck, axis=1)
           + M * jnp.sum((ybar_ck - mean[:, None]) ** 2, axis=1)) / count
    inv_std = jax.lax.rsqrt(var + eps)                 # biased var (PyTorch train-mode BN)
    scale = gamma.astype(jnp.float32) * inv_std
    shift = beta.astype(jnp.float32) - mean * scale
    row_scale = jnp.repeat(jnp.pad(scale, (0, Cout_pad - Cout)), KK).reshape(Ncols, 1)
    row_shift = jnp.repeat(jnp.pad(shift, (0, Cout_pad - Cout)), KK).reshape(Ncols, 1)

    # --- pass 2: the deconv matmul + folded BN affine; parallel over M tiles ---
    # NOTE: if the small LHS copy ever shows as exposed latency in xprof, add
    # pipeline_mode=pl.Buffered(3) to the Xt BlockSpec below (cheap: ~tm*16 extra bytes).
    y_t = pl.pallas_call(
        _deconv_bn_kernel,
        out_shape=jax.ShapeDtypeStruct((Ncols, M_pad), jnp.float32),
        grid_spec=pltpu.PrefetchScalarGridSpec(
            num_scalar_prefetch=0,
            grid=(n_rows,),
            in_specs=[
                pl.BlockSpec((Ncols, Cin), lambda i: (0, 0)),
                pl.BlockSpec((Cin, tm), lambda i: (0, i)),
                pl.BlockSpec((Ncols, 1), lambda i: (0, 0)),
                pl.BlockSpec((Ncols, 1), lambda i: (0, 0)),
            ],
            out_specs=pl.BlockSpec((Ncols, tm), lambda i: (0, i)),
        ),
        compiler_params=compiler_params,
    )(w_flat, x_cm, row_scale, row_shift)

    # TODO(synk): BatchNorm running_mean/running_var buffer updates (training-mode side
    # effects) are not materialized; the forward output does not depend on them.
    # TODO(synk): the pixel shuffle below is still one output-sized XLA copy; fully
    # fusing it (in-kernel kh/kw interleave + NCHW block stores) is possible but omitted.

    # --- glue: single transpose (c, kh, kw, n, i, j) -> NCHW (n, c, 2i+kh, 2j+kw) ---
    y = y_t[:Cout * KK, :M].reshape(Cout, KH, KW, N, H, W)
    y = jnp.transpose(y, (3, 0, 4, 1, 5, 2)).reshape(N, Cout, H * KH, W * KW)
    return y


# -------------------------------- reference ----------------------------------


def _reference(x, weight, bias, gamma, beta, stride, eps=1e-5):
    # ConvTranspose2d == lhs-dilated conv with the flipped, channel-swapped kernel.
    KH, KW = weight.shape[2], weight.shape[3]
    w_oihw = jnp.flip(jnp.transpose(weight, (1, 0, 2, 3)), axis=(2, 3))
    y = jax.lax.conv_general_dilated(
        x.astype(jnp.float32), w_oihw.astype(jnp.float32),
        window_strides=(1, 1),
        padding=[(KH - 1, KH - 1), (KW - 1, KW - 1)],
        lhs_dilation=(stride, stride),
        dimension_numbers=("NCHW", "OIHW", "NCHW"),
    ) + bias.reshape(1, -1, 1, 1)
    mu = jnp.mean(y, axis=(0, 2, 3), keepdims=True)
    var = jnp.var(y, axis=(0, 2, 3), keepdims=True)
    return ((y - mu) * jax.lax.rsqrt(var + eps) * gamma.reshape(1, -1, 1, 1)
            + beta.reshape(1, -1, 1, 1))


if __name__ == "__main__":
    key = jax.random.PRNGKey(0)
    k_x, k_w, k_b, k_x2, k_w2, k_b2, k_g2, k_be2 = jax.random.split(key, 8)

    # Config A: nominal module shapes; tm=128 forces a multi-tile grid so the demo
    # exercises the partial-sum stats reduction and multi-block pass 2
    # (production default leaves tm=None -> VMEM-budgeted tile).
    N, Cin, H, W = 2, 4, 16, 16
    Cout, K, stride = 8, 2, 2
    x = jax.random.normal(k_x, (N, Cin, H, W), jnp.float32)
    bound = 1.0 / math.sqrt(Cout * K * K)           # PyTorch ConvTranspose2d fan-in
    weight = jax.random.uniform(k_w, (Cin, Cout, K, K), jnp.float32, -bound, bound)
    bias = jax.random.uniform(k_b, (Cout,), jnp.float32, -bound, bound)
    gamma = jnp.ones((Cout,), jnp.float32)          # BatchNorm2d affine init
    beta = jnp.zeros((Cout,), jnp.float32)

    out = transpose_conv_forward(x, weight, bias, gamma, beta, stride=stride, tm=128)
    out = jax.block_until_ready(out)
    ref = _reference(x, weight, bias, gamma, beta, stride)
    assert out.shape == (N, Cout, 2 * H, 2 * W), out.shape
    err = float(jnp.max(jnp.abs(out - ref)))
    # tolerance accounts for bf16 MXU inputs vs f32 reference
    assert jnp.allclose(out, ref, atol=5e-2, rtol=5e-2), err

    # Config B: ragged M (lane padding), odd Cout (sublane padding), auto (budgeted) tm.
    N2, Cin2, H2, W2, Cout2 = 1, 3, 10, 10, 5
    x2 = jax.random.normal(k_x2, (N2, Cin2, H2, W2), jnp.float32)
    bound2 = 1.0 / math.sqrt(Cout2 * K * K)
    w2 = jax.random.uniform(k_w2, (Cin2, Cout2, K, K), jnp.float32, -bound2, bound2)
    b2 = jax.random.uniform(k_b2, (Cout2,), jnp.float32, -bound2, bound2)
    g2 = jax.random.uniform(k_g2, (Cout2,), jnp.float32, 0.5, 1.5)
    be2 = 0.1 * jax.random.normal(k_be2, (Cout2,), jnp.float32)

    out2 = transpose_conv_forward(x2, w2, b2, g2, be2, stride=stride)
    out2 = jax.block_until_ready(out2)
    ref2 = _reference(x2, w2, b2, g2, be2, stride)
    assert out2.shape == (N2, Cout2, 2 * H2, 2 * W2), out2.shape
    err2 = float(jnp.max(jnp.abs(out2 - ref2)))
    assert jnp.allclose(out2, ref2, atol=5e-2, rtol=5e-2), err2

    print("KERNEL_OK")
</pallas_src>

<mosaic_0001>
module attributes {stable_mosaic.version = 11 : i64} {
  func.func @_stats_kernel(%arg0: i32, %arg1: memref<4x128xbf16, #tpu.memory_space<vmem>>, %arg2: memref<1x4x4xf32, #tpu.memory_space<vmem>>, %arg3: memref<1x4x1xf32, #tpu.memory_space<vmem>>) attributes {dimension_semantics = [#tpu.dimension_semantics<parallel>], iteration_bounds = array<i64: 4>, scalar_prefetch = 0 : i64, scratch_operands = 0 : i64, tpu.core_type = #tpu.core_type<tc>, window_params = [{transform_indices = @transform_0, window_bounds = array<i64: 4, 128>}, {transform_indices = @transform_1, window_bounds = array<i64: 1, 4, 4>}, {transform_indices = @transform_2, window_bounds = array<i64: 1, 4, 1>}]} {
    %c0 = arith.constant 0 : index
    %c0_0 = arith.constant 0 : index
    %0 = vector.load %arg1[%c0, %c0_0] : memref<4x128xbf16, #tpu.memory_space<vmem>>, vector<4x128xbf16>
    %1 = arith.extf %0 : vector<4x128xbf16> to vector<4x128xf32>
    %cst = arith.constant dense<0.000000e+00> : vector<4x4xf32>
    %2 = tpu.matmul %1, %1, %cst {dimension_numbers = #tpu.dot_dimension_numbers<[1], [1], [0], [0], [0, 0, 1, 0], [], []>} : vector<4x128xf32>, vector<4x128xf32>, vector<4x4xf32> -> vector<4x4xf32>
    %c0_1 = arith.constant 0 : index
    %c0_2 = arith.constant 0 : index
    %c0_3 = arith.constant 0 : index
    %3 = vector.load %arg2[%c0_1, %c0_2, %c0_3] : memref<1x4x4xf32, #tpu.memory_space<vmem>>, vector<1x4x4xf32>
    %4 = vector.shape_cast %3 : vector<1x4x4xf32> to vector<4x4xf32>
    %5 = vector.shape_cast %2 : vector<4x4xf32> to vector<1x4x4xf32>
    tpu.vector_store %arg2[%c0_1, %c0_2, %c0_3], %5 {strides = array<i32>} : memref<1x4x4xf32, #tpu.memory_space<vmem>>, vector<1x4x4xf32>,
    %cst_4 = arith.constant dense<0.000000e+00> : vector<4xf32>
    %6 = vector.multi_reduction <add>, %1, %cst_4 [1] : vector<4x128xf32> to vector<4xf32>
    %7 = vector.shape_cast %6 : vector<4xf32> to vector<4x1xf32>
    %c0_5 = arith.constant 0 : index
    %c0_6 = arith.constant 0 : index
    %c0_7 = arith.constant 0 : index
    %8 = vector.load %arg3[%c0_5, %c0_6, %c0_7] : memref<1x4x1xf32, #tpu.memory_space<vmem>>, vector<1x4x1xf32>
    %9 = vector.shape_cast %8 : vector<1x4x1xf32> to vector<4x1xf32>
    %10 = vector.shape_cast %7 : vector<4x1xf32> to vector<1x4x1xf32>
    tpu.vector_store %arg3[%c0_5, %c0_6, %c0_7], %10 {strides = array<i32>} : memref<1x4x1xf32, #tpu.memory_space<vmem>>, vector<1x4x1xf32>,
    return
  }
  func.func @transform_0(%arg0: i32) -> (i32, i32) {
    %c0_i32 = arith.constant 0 : i32
    %c0_i32_0 = arith.constant 0 : i32
    return %c0_i32, %arg0 : i32, i32
  }
  func.func @transform_1(%arg0: i32) -> (i32, i32, i32) {
    %c0_i32 = arith.constant 0 : i32
    %c0_i32_0 = arith.constant 0 : i32
    %c0_i32_1 = arith.constant 0 : i32
    return %arg0, %c0_i32, %c0_i32_0 : i32, i32, i32
  }
  func.func @transform_2(%arg0: i32) -> (i32, i32, i32) {
    %c0_i32 = arith.constant 0 : i32
    %c0_i32_0 = arith.constant 0 : i32
    %c0_i32_1 = arith.constant 0 : i32
    return %arg0, %c0_i32, %c0_i32_0 : i32, i32, i32
  }
}

</mosaic_0001>

<llo_original>
// kernel: tpu_custom_call.1
$region0: #{tpu_custom_call.1}
  #allocation0 [shape = 'u32[]', space=smem, size = 0x4, offset = 0x4, fixed_abs, tag = 'smem constant byte address 0x4 - core index']
  #allocation1 [shape = 'u32[144,128]{1,0:T(1,128)}', space=vmem, size = 0x12000, scoped, tag = 'internal scratch']
  %s0 = inlined_call_operand.hbm [shape: bf16[4,512], index: 0, kind: input, shape index: {}]
  %s1 = inlined_call_operand.hbm [shape: f32[4,4,4], index: 1, kind: output, shape index: {0}]
  %s2 = inlined_call_operand.vmem [shape: f32[4,4,1], index: 2, kind: output, shape index: {1}]
  %3 = xla_tuple %s1, %s2
  %s4 = sld [smem:[#allocation0]]
  $region49: #{tpu_custom_call.1} parent=0
    _
  %s6 = ssub.s32 1, %s4
  %s7 = scalar_select 0, %s6, %s4
  $region1: #{tpu_custom_call.1} parent=0
    #allocation2 [shape = 'u8[2048]{0}', space=vmem, size = 0x800, scoped, tag = 'input window, operand 0']
    #allocation3 [shape = 's32[2]{0}', space=sflag, size = 0x8, scoped, tag = 'scoped memory for tpu_custom_call.1']
    #allocation4 [shape = 's32[2]{0}', space=sflag, size = 0x8, scoped, tag = 'scoped memory for tpu_custom_call.1']
    #allocation5 [shape = 'u8[4096]{0}', space=vmem, size = 0x1000, scoped, tag = 'output window, operand 0']
    %8 = vsyncpa [#allocation3], 0
    %s9 = scalar_lea.sflag [#allocation3], 1
    %10 = vsyncpa %s9, 0
    %11 = vsyncpa [#allocation4], 0
    %s12 = scalar_lea.sflag [#allocation4], 1
    %13 = vsyncpa %s12, 0
    loop: start=0, step=1, limit=6
    $region2: #{tpu_custom_call.1} parent=1 // loop_pre_header
      _
    $region3: #{tpu_custom_call.1} parent=1 // loop_header
      %s15 = sphi 0, %s19
      %p16 = scmp.ge.s32.totalorder %s15, 6
      %s25 = sphi 0, %s27
      %s28 = sphi 0, %s25
      %s29 = sphi 0, %s28
      %s45 = sphi 0, %s29
      %s51 = sphi 0, %s53
      %s54 = sphi 0, %s51
      %s55 = sphi 0, %s54
      %s71 = sphi 0, %s55
      %s77 = sphi 0, %s79
      %s80 = sphi 0, %s77
      %s81 = sphi 0, %s80
      %s97 = sphi 0, %s81
    $region4: #{tpu_custom_call.1} parent=1 // loop_header_branch
      %18 = sbr.rel (%p16) target = $region8
    $region5: #{tpu_custom_call.1} parent=1 // loop_body
      %s20 = ssub.s32 %s15, 1
      %s21 = ssub.s32 %s15, 2
      %s22 = sadd.s32 %s15, 1
      %s23 = ssub.s32 %s15, %s22
      %p24 = scmp.eq.s32.totalorder %s23, 0
      %s26 = sadd.s32 %s25, 1
      %s27 = scalar_select %p24, %s25, %s26
      %p30 = pneg %p24
      %p31 = scmp.eq.s32.totalorder %s15, 3
      %p32 = por %p30, %p31
      %p33 = scmp.ne.s32.totalorder %s25, %s28
      %p34 = scmp.eq.s32.totalorder %s15, 0
      %p35 = por %p33, %p34
      %p36 = scmp.ne.s32.totalorder %s25, %s28
      %p37 = scmp.eq.s32.totalorder %s20, 3
      %p38 = por %p36, %p37
      %p39 = scmp.ne.s32.totalorder %s28, %s29
      %p40 = scmp.eq.s32.totalorder %s20, 0
      %p41 = por %p39, %p40
      %p42 = scmp.ne.s32.totalorder %s28, %s29
      %p43 = scmp.eq.s32.totalorder %s21, 3
      %p44 = por %p42, %p43
      %p46 = scmp.ne.s32.totalorder %s29, %s45
      %p47 = scmp.eq.s32.totalorder %s21, 0
      %p48 = por %p46, %p47
      %s49 = ssub.s32 %s15, %s22
      %p50 = scmp.eq.s32.totalorder %s49, 0
      %s52 = sadd.s32 %s51, 1
      %s53 = scalar_select %p50, %s51, %s52
      %p56 = pneg %p50
      %p57 = scmp.eq.s32.totalorder %s15, 3
      %p58 = por %p56, %p57
      %p59 = scmp.ne.s32.totalorder %s51, %s54
      %p60 = scmp.eq.s32.totalorder %s15, 0
      %p61 = por %p59, %p60
      %p62 = scmp.ne.s32.totalorder %s51, %s54
      %p63 = scmp.eq.s32.totalorder %s20, 3
      %p64 = por %p62, %p63
      %p65 = scmp.ne.s32.totalorder %s54, %s55
      %p66 = scmp.eq.s32.totalorder %s20, 0
      %p67 = por %p65, %p66
      %p68 = scmp.ne.s32.totalorder %s54, %s55
      %p69 = scmp.eq.s32.totalorder %s21, 3
      %p70 = por %p68, %p69
      %p72 = scmp.ne.s32.totalorder %s55, %s71
      %p73 = scmp.eq.s32.totalorder %s21, 0
      %p74 = por %p72, %p73
      %s75 = ssub.s32 %s15, %s22
      %p76 = scmp.eq.s32.totalorder %s75, 0
      %s78 = sadd.s32 %s77, 1
      %s79 = scalar_select %p76, %s77, %s78
      %p82 = pneg %p76
      %p83 = scmp.eq.s32.totalorder %s15, 3
      %p84 = por %p82, %p83
      %p85 = scmp.ne.s32.totalorder %s77, %s80
      %p86 = scmp.eq.s32.totalorder %s15, 0
      %p87 = por %p85, %p86
      %p88 = scmp.ne.s32.totalorder %s77, %s80
      %p89 = scmp.eq.s32.totalorder %s20, 3
      %p90 = por %p88, %p89
      %p91 = scmp.ne.s32.totalorder %s80, %s81
      %p92 = scmp.eq.s32.totalorder %s20, 0
      %p93 = por %p91, %p92
      %p94 = scmp.ne.s32.totalorder %s80, %s81
      %p95 = scmp.eq.s32.totalorder %s21, 3
      %p96 = por %p94, %p95
      %p98 = scmp.ne.s32.totalorder %s81, %s97
      %p99 = scmp.eq.s32.totalorder %s21, 0
      %p100 = por %p98, %p99
      %p101 = scmp.le.s32.totalorder 1, %s15
      %p102 = scmp.lt.s32.totalorder %s15, 5
      %p103 = pnand %p101, %p102
      %p104 = pneg %p103
      // Predicated region
      $region9: #{tpu_custom_call.1} parent=5 // pred_check
        _
      $region10: #{tpu_custom_call.1} parent=5 // pred_check_branch
        %106 = sbr.rel (%p103) target = $region12
      $region11: #{tpu_custom_call.1} parent=5 // pred_region
        %s107 = ssub.s32 %s15, 1
      $region12: #{tpu_custom_call.1} parent=5 // pred_fallthru
        _
      %p108 = scmp.lt.s32.totalorder %s15, 4
      // Predicated region
      $region13: #{tpu_custom_call.1} parent=5 // pred_check
        %p109 = pneg %p108
      $region14: #{tpu_custom_call.1} parent=5 // pred_check_branch
        %111 = sbr.rel (%p109) target = $region16
      $region15: #{tpu_custom_call.1} parent=5 // pred_region
        // Predicated region
        $region17: #{tpu_custom_call.1} parent=15 // pred_check
          %p112 = pneg %p35
        $region18: #{tpu_custom_call.1} parent=15 // pred_check_branch
          %114 = sbr.rel (%p112) target = $region20
        $region19: #{tpu_custom_call.1} parent=15 // pred_region
          %s115 = sand.u32 %s25, 1
          %s116 = scalar_lea.sflag [#allocation3], %s115
          %s117 = sand.u32 %s25, 1
          %s118 = smul.addr %s117, 2
          %s119 = scalar_lea.vmem [#allocation2], %s118
          %s121 = ssub.s32 32, 32
          %122 = vsyncadd %s116, %s121
          %s123 = smul.addr %s15, 32
          %s124 = scalar_lea.hbm %s0, %s123
          %s126 = sshll.u32 %s119, 4
          %s127 = int_to_ptr.vmem [resolvable:$true] %s126
          %129 = dma.hbm_to_vmem [thread:$0]  %s124, 32, %s127, %s116
        $region20: #{tpu_custom_call.1} parent=15 // pred_fallthru
          _
      $region16: #{tpu_custom_call.1} parent=5 // pred_fallthru
        _
      %p130 = scmp.le.s32.totalorder 1, %s15
      %p131 = scmp.lt.s32.totalorder %s15, 5
      %p132 = pnand %p130, %p131
      %p133 = pneg %p132
      // Predicated region
      $region21: #{tpu_custom_call.1} parent=5 // pred_check
        _
      $region22: #{tpu_custom_call.1} parent=5 // pred_check_branch
        %135 = sbr.rel (%p132) target = $region24
      $region23: #{tpu_custom_call.1} parent=5 // pred_region
        %s136 = ssub.s32 %s15, 1
        %s137 = sand.u32 %s28, 1
        %s138 = scalar_lea.sflag [#allocation3], %s137
        %s139 = sand.u32 %s28, 1
        %s140 = smul.addr %s139, 2
        %s141 = scalar_lea.vmem [#allocation2], %s140
        // Predicated region
        $region25: #{tpu_custom_call.1} parent=23 // pred_check
          %p142 = pneg %p41
        $region26: #{tpu_custom_call.1} parent=23 // pred_check_branch
          %144 = sbr.rel (%p142) target = $region28
        $region27: #{tpu_custom_call.1} parent=23 // pred_region
          %145 = dma.done %s138, 32
        $region28: #{tpu_custom_call.1} parent=23 // pred_fallthru
          _
        %s146 = sand.u32 %s28, 1
        %s147 = scalar_lea.sflag [#allocation3], %s146
        %s148 = sand.u32 %s28, 1
        %s149 = smul.addr %s148, 2
        %s150 = scalar_lea.vmem [#allocation2], %s149
        %p151 = pneg %p41
        %p152 = pneg %p38
        %p153 = pneg %p67
        %p154 = pneg %p64
        %s155 = sand.u32 %s54, 1
        %s156 = scalar_lea.sflag [#allocation4], %s155
        %s157 = sand.u32 %s54, 1
        %s158 = smul.addr %s157, 4
        %s159 = scalar_lea.vmem [#allocation5], %s158
        %p160 = pneg %p93
        %p161 = pneg %p90
        %p162 = scmp.lt.s32.totalorder %s20, 3
        %s163 = scalar_select %p162, %s20, 3
        %s164 = smul.addr %s163, 4
        %s165 = scalar_lea.vmem %s2, %s164
        %p166 = scmp.lt.s32.totalorder %s20, 3
        %s167 = scalar_select %p166, %s20, 3
        %s168 = smul.addr %s167, 4
        %s169 = scalar_lea.vmem %s2, %s168
        %v170 = vld [vmem:[%s141] sm:$0x3]
        %v171 = vunpack.c.l.bf16 %v170
        %172 = vmatprep.subr.mxu0 0.0
        %173 = vmatpush1.xpose.msra.mxu0 %v171
        %174 = vmatprep.subr.mxu0 0.0
        %175 = vmatpush1.xpose.msra.mxu0 0.0
        %176 = vmatprep.subr.mxu0 0.0
        %177 = vmatpush1.xpose.msra.mxu0 0.0
        %178 = vmatprep.subr.mxu0 0.0
        %179 = vmatpush1.xpose.msra.mxu0 0.0
        %180 = vmatprep.subr.mxu0 0.0
        %181 = vmatpush1.xpose.msra.mxu0 0.0
        %182 = vmatprep.subr.mxu0 0.0
        %183 = vmatpush1.xpose.msra.mxu0 0.0
        %184 = vmatprep.subr.mxu0 0.0
        %185 = vmatpush1.xpose.msra.mxu0 0.0
        %186 = vmatprep.subr.mxu0 0.0
        %187 = vmatpush1.xpose.msra.mxu0 0.0
        %188 = vmatprep.subr.mxu0 0.0
        %189 = vmatpush1.xpose.msra.mxu0 0.0
        %190 = vmatprep.subr.mxu0 0.0
        %191 = vmatpush1.xpose.msra.mxu0 0.0
        %192 = vmatprep.subr.mxu0 0.0
        %193 = vmatpush1.xpose.msra.mxu0 0.0
        %194 = vmatprep.subr.mxu0 0.0
        %195 = vmatpush1.xpose.msra.mxu0 0.0
        %196 = vmatprep.subr.mxu0 0.0
        %197 = vmatpush1.xpose.msra.mxu0 0.0
        %198 = vmatprep.subr.mxu0 0.0
        %199 = vmatpush1.xpose.msra.mxu0 0.0
        %200 = vmatprep.subr.mxu0 0.0
        %201 = vmatpush1.xpose.msra.mxu0 0.0
        %202 = vmatprep.subr.mxu0 0.0
        %203 = vmatpush1.xpose.msra.mxu0 0.0
        %204 = vmatprep.subr.mxu0 0.0
        %205 = vmatpush1.xpose.msra.mxu0 0.0
        %206 = vmatprep.subr.mxu0 0.0
        %207 = vmatpush1.xpose.msra.mxu0 0.0
        %208 = vmatprep.subr.mxu0 0.0
        %209 = vmatpush1.xpose.msra.mxu0 0.0
        %210 = vmatprep.subr.mxu0 0.0
        %211 = vmatpush1.xpose.msra.mxu0 0.0
        %212 = vmatprep.subr.mxu0 0.0
        %213 = vmatpush1.xpose.msra.mxu0 0.0
        %214 = vmatprep.subr.mxu0 0.0
        %215 = vmatpush1.xpose.msra.mxu0 0.0
        %216 = vmatprep.subr.mxu0 0.0
        %217 = vmatpush1.xpose.msra.mxu0 0.0
        %218 = vmatprep.subr.mxu0 0.0
        %219 = vmatpush1.xpose.msra.mxu0 0.0
        %220 = vmatprep.subr.mxu0 0.0
        %221 = vmatpush1.xpose.msra.mxu0 0.0
        %222 = vmatprep.subr.mxu0 0.0
        %223 = vmatpush1.xpose.msra.mxu0 0.0
        %224 = vmatprep.subr.mxu0 0.0
        %225 = vmatpush1.xpose.msra.mxu0 0.0
        %226 = vmatprep.subr.mxu0 0.0
        %227 = vmatpush1.xpose.msra.mxu0 0.0
        %228 = vmatprep.subr.mxu0 0.0
        %229 = vmatpush1.xpose.msra.mxu0 0.0
        %230 = vmatprep.subr.mxu0 0.0
        %231 = vmatpush1.xpose.msra.mxu0 0.0
        %232 = vmatprep.subr.mxu0 0.0
        %233 = vmatpush1.xpose.msra.mxu0 0.0
        %234 = vmatprep.subr.mxu0 0.0
        %235 = vmatpush1.xpose.msra.mxu0 0.0
        %236 = vmatprep.mubr.f32.mxu0 0.0
        %237 = vmatmul.mubr.f32.gmra.mrb[0].mxu0 %v171
        %v238 = vpop.f32.mrb[0].mxu0
        %v239 = vadd.f32 0.0, %v238
        %v240 = vpop.f32.mrb[0].mxu0
        %241 = vdwg.mxu0
        %vm242 = vcmask 27648
        %243 = vst.msk [vmem:[%s159] sm:$0xf] %vm242, %v239
        %vm244 = vcmask 1043456
        %v245 = vsel %vm244, %v171, 0.0
        %246 = vadd.xlane.f32.xlu0 %v245
        %v247 = vpop.xlane.xlu0 %246
        %vm248 = vcmask 3072
        %249 = vst.msk [vmem:[%s169] sm:$0xf] %vm248, %v247
        %s250 = sand.u32 %s54, 1
        %s251 = scalar_lea.sflag [#allocation4], %s250
        %s252 = sand.u32 %s54, 1
        %s253 = smul.addr %s252, 4
        %s254 = scalar_lea.vmem [#allocation5], %s253
        %p255 = scmp.lt.s32.totalorder %s20, 3
        %s256 = scalar_select %p255, %s20, 3
        %s257 = smul.addr %s256, 4
        %s258 = scalar_lea.vmem %s2, %s257
        // Predicated region
        $region29: #{tpu_custom_call.1} parent=23 // pred_check
          %p259 = pneg %p64
        $region30: #{tpu_custom_call.1} parent=23 // pred_check_branch
          %261 = sbr.rel (%p259) target = $region32
        $region31: #{tpu_custom_call.1} parent=23 // pred_region
          %s263 = ssub.s32 64, 64
          %264 = vsyncadd %s251, %s263
          %s265 = smul.addr %s20, 64
          %s266 = scalar_lea.hbm %s1, %s265
          %s268 = sshll.u32 %s254, 4
          %s269 = int_to_ptr.vmem [resolvable:$true] %s268
          %271 = dma.vmem_to_hbm [thread:$0]  %s269, 64, %s266, %s251
        $region32: #{tpu_custom_call.1} parent=23 // pred_fallthru
          _
        // Predicated region
        $region33: #{tpu_custom_call.1} parent=23 // pred_check
          %p272 = pneg %p90
        $region34: #{tpu_custom_call.1} parent=23 // pred_check_branch
          %274 = sbr.rel (%p272) target = $region36
        $region35: #{tpu_custom_call.1} parent=23 // pred_region
          _
        $region36: #{tpu_custom_call.1} parent=23 // pred_fallthru
          _
      $region24: #{tpu_custom_call.1} parent=5 // pred_fallthru
        _
      %p275 = scmp.le.s32.totalorder 2, %s15
      // Predicated region
      $region37: #{tpu_custom_call.1} parent=5 // pred_check
        %p276 = pneg %p275
      $region38: #{tpu_custom_call.1} parent=5 // pred_check_branch
        %278 = sbr.rel (%p276) target = $region40
      $region39: #{tpu_custom_call.1} parent=5 // pred_region
        %s279 = ssub.s32 %s15, 2
        // Predicated region
        $region41: #{tpu_custom_call.1} parent=39 // pred_check
          %p280 = pneg %p70
        $region42: #{tpu_custom_call.1} parent=39 // pred_check_branch
          %282 = sbr.rel (%p280) target = $region44
        $region43: #{tpu_custom_call.1} parent=39 // pred_region
          %s283 = sand.u32 %s55, 1
          %s284 = scalar_lea.sflag [#allocation4], %s283
          %s285 = sand.u32 %s55, 1
          %s286 = smul.addr %s285, 4
          %s287 = scalar_lea.vmem [#allocation5], %s286
          %288 = dma.done %s284, 64
        $region44: #{tpu_custom_call.1} parent=39 // pred_fallthru
          _
        // Predicated region
        $region45: #{tpu_custom_call.1} parent=39 // pred_check
          %p289 = pneg %p96
        $region46: #{tpu_custom_call.1} parent=39 // pred_check_branch
          %291 = sbr.rel (%p289) target = $region48
        $region47: #{tpu_custom_call.1} parent=39 // pred_region
          %p292 = scmp.lt.s32.totalorder %s21, 3
          %s293 = scalar_select %p292, %s21, 3
          %s294 = smul.addr %s293, 4
          %s295 = scalar_lea.vmem %s2, %s294
        $region48: #{tpu_custom_call.1} parent=39 // pred_fallthru
          _
      $region40: #{tpu_custom_call.1} parent=5 // pred_fallthru
        _
    $region6: #{tpu_custom_call.1} parent=1 // loop_footer
      %s19 = sadd.s32 1, %s15
    $region7: #{tpu_custom_call.1} parent=1 // loop_footer_branch
      %14 = sbr.rel target = $region3
    $region8: #{tpu_custom_call.1} parent=1 // loop_exit
      _
    %296 = vsyncpa [#allocation3], 1
    %s297 = scalar_lea.sflag [#allocation3], 1
    %298 = vsyncpa %s297, 1
    %299 = vsyncpa [#allocation4], 1
    %s300 = scalar_lea.sflag [#allocation4], 1
    %301 = vsyncpa %s300, 1

</llo_original>
